<compile_context>
chip_gen: v6e
topology: v6e:2x2x1
jax: 0.10.0
libtpu: 0.0.40
codegen_flags: <defaults>
</compile_context>

<pallas_src>
import math

import jax
import jax.numpy as jnp
from jax.experimental import pallas as pl
from jax.experimental.pallas import tpu as pltpu

_CONST = -0.08799999999999997

_LANE = 128
_MAX_LANE_WIDTH = 64 * _LANE            # at most 8192 lanes per row
_TARGET_BLOCK_BYTES = 2 * 1024 * 1024   # ~2 MiB per block buffer


def _add_const_kernel(x_ref, o_ref):
    # Pure VPU elementwise op on the resident VMEM tile.
    o_ref[...] = (x_ref[...].astype(jnp.float32) + _CONST).astype(o_ref.dtype)


def _choose_lane_width(total):
    """Largest multiple-of-128 divisor of `total` (<= _MAX_LANE_WIDTH).

    Prefers a width whose row count is a multiple of 8 so row tiles satisfy the
    (8, 128) block constraint when the array is large enough to need tiling.
    """
    best = None
    best_rows_mult8 = None
    w = _LANE
    while w <= _MAX_LANE_WIDTH:
        if total % w == 0:
            rows = total // w
            if best is None or w > best:
                best = w
            if rows % 8 == 0 and (best_rows_mult8 is None or w > best_rows_mult8):
                best_rows_mult8 = w
        w += _LANE
    return best_rows_mult8 if best_rows_mult8 is not None else best


def add_const(x):
    """x8 = x7 + (-0.08799999999999997), same semantics as the PyTorch module."""
    orig_shape = x.shape
    total = math.prod(orig_shape)
    itemsize = jnp.dtype(x.dtype).itemsize

    w = _choose_lane_width(total)
    if w is None:
        # Fallback (element count not a multiple of 128): single full-array block.
        # Correct, just not lane-dense.
        last = orig_shape[-1] if len(orig_shape) >= 1 else 1
        rows = max(total // max(last, 1), 1)
        x2d = x.reshape(rows, last)
        out = pl.pallas_call(
            _add_const_kernel,
            out_shape=jax.ShapeDtypeStruct(x2d.shape, x.dtype),
            grid_spec=pl.GridSpec(
                grid=(1,),
                in_specs=[pl.BlockSpec(x2d.shape, lambda i: (0, 0))],
                out_specs=pl.BlockSpec(x2d.shape, lambda i: (0, 0)),
            ),
        )(x2d)
        return out.reshape(orig_shape)

    rows = total // w
    x2d = x.reshape(rows, w)  # free view for a contiguous array

    # Biggest row tile that keeps one block <= ~2 MiB, rounded down to a multiple of 8.
    max_rows = max(8, (_TARGET_BLOCK_BYTES // (w * itemsize)) // 8 * 8)
    block_rows = rows if rows <= max_rows else max_rows
    grid = (pl.cdiv(rows, block_rows),)

    out = pl.pallas_call(
        _add_const_kernel,
        out_shape=jax.ShapeDtypeStruct((rows, w), x.dtype),
        grid_spec=pl.GridSpec(
            grid=grid,
            in_specs=[pl.BlockSpec((block_rows, w), lambda i: (i, 0))],
            out_specs=pl.BlockSpec((block_rows, w), lambda i: (i, 0)),
        ),
        compiler_params=pltpu.CompilerParams(
            dimension_semantics=("parallel",),
        ),
    )(x2d)
    return out.reshape(orig_shape)


if __name__ == "__main__":
    key = jax.random.PRNGKey(0)
    # Shape implied by the module's forward: [1, 1, 224, 224] (float32, ~200 KiB).
    x7 = jax.random.normal(key, (1, 1, 224, 224), dtype=jnp.float32)

    x8 = add_const(x7)
    jax.block_until_ready(x8)

    ref = x7 + _CONST
    assert x8.shape == ref.shape and x8.dtype == ref.dtype
    assert jnp.allclose(x8, ref, atol=1e-6, rtol=1e-6), "mismatch vs reference"
    print("KERNEL_OK")
</pallas_src>

<mosaic_0001>
module attributes {stable_mosaic.version = 11 : i64} {
  func.func @_add_const_kernel(%arg0: i32, %arg1: memref<8x6272xf32, #tpu.memory_space<vmem>>, %arg2: memref<8x6272xf32, #tpu.memory_space<vmem>>) attributes {dimension_semantics = [#tpu.dimension_semantics<parallel>], iteration_bounds = array<i64: 1>, scalar_prefetch = 0 : i64, scratch_operands = 0 : i64, tpu.core_type = #tpu.core_type<tc>, window_params = [{transform_indices = @transform_0, window_bounds = array<i64: 8, 6272>}, {transform_indices = @transform_1, window_bounds = array<i64: 8, 6272>}]} {
    %c0 = arith.constant 0 : index
    %c0_0 = arith.constant 0 : index
    %0 = vector.load %arg1[%c0, %c0_0] : memref<8x6272xf32, #tpu.memory_space<vmem>>, vector<8x6272xf32>
    %cst = arith.constant -0.0879999995 : f32
    %1 = vector.broadcast %cst : f32 to vector<8x6272xf32>
    %2 = arith.addf %0, %1 : vector<8x6272xf32>
    %c0_1 = arith.constant 0 : index
    %c0_2 = arith.constant 0 : index
    %3 = vector.load %arg2[%c0_1, %c0_2] : memref<8x6272xf32, #tpu.memory_space<vmem>>, vector<8x6272xf32>
    tpu.vector_store %arg2[%c0_1, %c0_2], %2 {strides = array<i32>} : memref<8x6272xf32, #tpu.memory_space<vmem>>, vector<8x6272xf32>,
    return
  }
  func.func @transform_0(%arg0: i32) -> (i32, i32) {
    %c0_i32 = arith.constant 0 : i32
    %c0_i32_0 = arith.constant 0 : i32
    return %arg0, %c0_i32 : i32, i32
  }
  func.func @transform_1(%arg0: i32) -> (i32, i32) {
    %c0_i32 = arith.constant 0 : i32
    %c0_i32_0 = arith.constant 0 : i32
    return %arg0, %c0_i32 : i32, i32
  }
}

</mosaic_0001>

<llo_original>
// kernel: tpu_custom_call.1
$region0: #{tpu_custom_call.1}
  #allocation0 [shape = 'u32[]', space=smem, size = 0x4, offset = 0x4, fixed_abs, tag = 'smem constant byte address 0x4 - core index']
  #allocation1 [shape = 'u32[144,128]{1,0:T(1,128)}', space=vmem, size = 0x12000, scoped, tag = 'internal scratch']
  %s0 = inlined_call_operand.hbm [shape: f32[8,6272], index: 0, kind: input, shape index: {}]
  %s1 = inlined_call_operand.hbm [shape: f32[8,6272], index: 1, kind: output, shape index: {}]
  %s2 = sld [smem:[#allocation0]]
  $region18: #{tpu_custom_call.1} parent=0
    _
  %s4 = ssub.s32 1, %s2
  %s5 = scalar_select 0, %s4, %s2
  $region1: #{tpu_custom_call.1} parent=0
    #allocation2 [shape = 'u8[200704]{0}', space=vmem, size = 0x31000, scoped, tag = 'input window, operand 0, single buffered']
    #allocation3 [shape = 's32[1]{0}', space=sflag, size = 0x4, scoped, tag = 'scoped memory for tpu_custom_call.1']
    #allocation4 [shape = 's32[1]{0}', space=sflag, size = 0x4, scoped, tag = 'scoped memory for tpu_custom_call.1']
    #allocation5 [shape = 'u8[200704]{0}', space=vmem, size = 0x31000, scoped, tag = 'output window, operand 0, single buffered']
    %6 = vsyncpa [#allocation3], 0
    %7 = vsyncpa [#allocation4], 0
    // Predicated region
    $region2: #{tpu_custom_call.1} parent=1 // pred_check
      _
    $region3: #{tpu_custom_call.1} parent=1 // pred_check_branch
      %9 = sbr.rel (0) target = $region5
    $region4: #{tpu_custom_call.1} parent=1 // pred_region
      %s11 = ssub.s32 6272, 6272
      %12 = vsyncadd [#allocation3], %s11
      %s14 = sshll.u32 [#allocation2], 4
      %s15 = int_to_ptr.vmem [resolvable:$true] %s14
      %17 = dma.hbm_to_vmem [thread:$0]  %s0, 6272, %s15, [#allocation3]
    $region5: #{tpu_custom_call.1} parent=1 // pred_fallthru
      _
    // Predicated region
    $region6: #{tpu_custom_call.1} parent=1 // pred_check
      _
    $region7: #{tpu_custom_call.1} parent=1 // pred_check_branch
      %19 = sbr.rel (0) target = $region9
    $region8: #{tpu_custom_call.1} parent=1 // pred_region
      %20 = dma.done [#allocation3], 6272
    $region9: #{tpu_custom_call.1} parent=1 // pred_fallthru
      _
    %v21 = vld [vmem:[#allocation2] sm:$0xff]
    %v22 = vld [vmem:[#allocation2 + $0x8] sm:$0xff]
    %v23 = vld [vmem:[#allocation2 + $0x10] sm:$0xff]
    %v24 = vld [vmem:[#allocation2 + $0x18] sm:$0xff]
    %v25 = vld [vmem:[#allocation2 + $0x20] sm:$0xff]
    %v26 = vld [vmem:[#allocation2 + $0x28] sm:$0xff]
    %v27 = vld [vmem:[#allocation2 + $0x30] sm:$0xff]
    %v28 = vld [vmem:[#allocation2 + $0x38] sm:$0xff]
    %v29 = vld [vmem:[#allocation2 + $0x40] sm:$0xff]
    %v30 = vld [vmem:[#allocation2 + $0x48] sm:$0xff]
    %v31 = vld [vmem:[#allocation2 + $0x50] sm:$0xff]
    %v32 = vld [vmem:[#allocation2 + $0x58] sm:$0xff]
    %v33 = vld [vmem:[#allocation2 + $0x60] sm:$0xff]
    %v34 = vld [vmem:[#allocation2 + $0x68] sm:$0xff]
    %v35 = vld [vmem:[#allocation2 + $0x70] sm:$0xff]
    %v36 = vld [vmem:[#allocation2 + $0x78] sm:$0xff]
    %v37 = vld [vmem:[#allocation2 + $0x80] sm:$0xff]
    %v38 = vld [vmem:[#allocation2 + $0x88] sm:$0xff]
    %v39 = vld [vmem:[#allocation2 + $0x90] sm:$0xff]
    %v40 = vld [vmem:[#allocation2 + $0x98] sm:$0xff]
    %v41 = vld [vmem:[#allocation2 + $0xa0] sm:$0xff]
    %v42 = vld [vmem:[#allocation2 + $0xa8] sm:$0xff]
    %v43 = vld [vmem:[#allocation2 + $0xb0] sm:$0xff]
    %v44 = vld [vmem:[#allocation2 + $0xb8] sm:$0xff]
    %v45 = vld [vmem:[#allocation2 + $0xc0] sm:$0xff]
    %v46 = vld [vmem:[#allocation2 + $0xc8] sm:$0xff]
    %v47 = vld [vmem:[#allocation2 + $0xd0] sm:$0xff]
    %v48 = vld [vmem:[#allocation2 + $0xd8] sm:$0xff]
    %v49 = vld [vmem:[#allocation2 + $0xe0] sm:$0xff]
    %v50 = vld [vmem:[#allocation2 + $0xe8] sm:$0xff]
    %v51 = vld [vmem:[#allocation2 + $0xf0] sm:$0xff]
    %v52 = vld [vmem:[#allocation2 + $0xf8] sm:$0xff]
    %v53 = vld [vmem:[#allocation2 + $0x100] sm:$0xff]
    %v54 = vld [vmem:[#allocation2 + $0x108] sm:$0xff]
    %v55 = vld [vmem:[#allocation2 + $0x110] sm:$0xff]
    %v56 = vld [vmem:[#allocation2 + $0x118] sm:$0xff]
    %v57 = vld [vmem:[#allocation2 + $0x120] sm:$0xff]
    %v58 = vld [vmem:[#allocation2 + $0x128] sm:$0xff]
    %v59 = vld [vmem:[#allocation2 + $0x130] sm:$0xff]
    %v60 = vld [vmem:[#allocation2 + $0x138] sm:$0xff]
    %v61 = vld [vmem:[#allocation2 + $0x140] sm:$0xff]
    %v62 = vld [vmem:[#allocation2 + $0x148] sm:$0xff]
    %v63 = vld [vmem:[#allocation2 + $0x150] sm:$0xff]
    %v64 = vld [vmem:[#allocation2 + $0x158] sm:$0xff]
    %v65 = vld [vmem:[#allocation2 + $0x160] sm:$0xff]
    %v66 = vld [vmem:[#allocation2 + $0x168] sm:$0xff]
    %v67 = vld [vmem:[#allocation2 + $0x170] sm:$0xff]
    %v68 = vld [vmem:[#allocation2 + $0x178] sm:$0xff]
    %v69 = vld [vmem:[#allocation2 + $0x180] sm:$0xff]
    %v70 = vadd.f32 %v21, -0.088
    %v71 = vadd.f32 %v22, -0.088
    %v72 = vadd.f32 %v23, -0.088
    %v73 = vadd.f32 %v24, -0.088
    %v74 = vadd.f32 %v25, -0.088
    %v75 = vadd.f32 %v26, -0.088
    %v76 = vadd.f32 %v27, -0.088
    %v77 = vadd.f32 %v28, -0.088
    %v78 = vadd.f32 %v29, -0.088
    %v79 = vadd.f32 %v30, -0.088
    %v80 = vadd.f32 %v31, -0.088
    %v81 = vadd.f32 %v32, -0.088
    %v82 = vadd.f32 %v33, -0.088
    %v83 = vadd.f32 %v34, -0.088
    %v84 = vadd.f32 %v35, -0.088
    %v85 = vadd.f32 %v36, -0.088
    %v86 = vadd.f32 %v37, -0.088
    %v87 = vadd.f32 %v38, -0.088
    %v88 = vadd.f32 %v39, -0.088
    %v89 = vadd.f32 %v40, -0.088
    %v90 = vadd.f32 %v41, -0.088
    %v91 = vadd.f32 %v42, -0.088
    %v92 = vadd.f32 %v43, -0.088
    %v93 = vadd.f32 %v44, -0.088
    %v94 = vadd.f32 %v45, -0.088
    %v95 = vadd.f32 %v46, -0.088
    %v96 = vadd.f32 %v47, -0.088
    %v97 = vadd.f32 %v48, -0.088
    %v98 = vadd.f32 %v49, -0.088
    %v99 = vadd.f32 %v50, -0.088
    %v100 = vadd.f32 %v51, -0.088
    %v101 = vadd.f32 %v52, -0.088
    %v102 = vadd.f32 %v53, -0.088
    %v103 = vadd.f32 %v54, -0.088
    %v104 = vadd.f32 %v55, -0.088
    %v105 = vadd.f32 %v56, -0.088
    %v106 = vadd.f32 %v57, -0.088
    %v107 = vadd.f32 %v58, -0.088
    %v108 = vadd.f32 %v59, -0.088
    %v109 = vadd.f32 %v60, -0.088
    %v110 = vadd.f32 %v61, -0.088
    %v111 = vadd.f32 %v62, -0.088
    %v112 = vadd.f32 %v63, -0.088
    %v113 = vadd.f32 %v64, -0.088
    %v114 = vadd.f32 %v65, -0.088
    %v115 = vadd.f32 %v66, -0.088
    %v116 = vadd.f32 %v67, -0.088
    %v117 = vadd.f32 %v68, -0.088
    %v118 = vadd.f32 %v69, -0.088
    %119 = vst [vmem:[#allocation5] sm:$0xff] %v70
    %120 = vst [vmem:[#allocation5 + $0x8] sm:$0xff] %v71
    %121 = vst [vmem:[#allocation5 + $0x10] sm:$0xff] %v72
    %122 = vst [vmem:[#allocation5 + $0x18] sm:$0xff] %v73
    %123 = vst [vmem:[#allocation5 + $0x20] sm:$0xff] %v74
    %124 = vst [vmem:[#allocation5 + $0x28] sm:$0xff] %v75
    %125 = vst [vmem:[#allocation5 + $0x30] sm:$0xff] %v76
    %126 = vst [vmem:[#allocation5 + $0x38] sm:$0xff] %v77
    %127 = vst [vmem:[#allocation5 + $0x40] sm:$0xff] %v78
    %128 = vst [vmem:[#allocation5 + $0x48] sm:$0xff] %v79
    %129 = vst [vmem:[#allocation5 + $0x50] sm:$0xff] %v80
    %130 = vst [vmem:[#allocation5 + $0x58] sm:$0xff] %v81
    %131 = vst [vmem:[#allocation5 + $0x60] sm:$0xff] %v82
    %132 = vst [vmem:[#allocation5 + $0x68] sm:$0xff] %v83
    %133 = vst [vmem:[#allocation5 + $0x70] sm:$0xff] %v84
    %134 = vst [vmem:[#allocation5 + $0x78] sm:$0xff] %v85
    %135 = vst [vmem:[#allocation5 + $0x80] sm:$0xff] %v86
    %136 = vst [vmem:[#allocation5 + $0x88] sm:$0xff] %v87
    %137 = vst [vmem:[#allocation5 + $0x90] sm:$0xff] %v88
    %138 = vst [vmem:[#allocation5 + $0x98] sm:$0xff] %v89
    %139 = vst [vmem:[#allocation5 + $0xa0] sm:$0xff] %v90
    %140 = vst [vmem:[#allocation5 + $0xa8] sm:$0xff] %v91
    %141 = vst [vmem:[#allocation5 + $0xb0] sm:$0xff] %v92
    %142 = vst [vmem:[#allocation5 + $0xb8] sm:$0xff] %v93
    %143 = vst [vmem:[#allocation5 + $0xc0] sm:$0xff] %v94
    %144 = vst [vmem:[#allocation5 + $0xc8] sm:$0xff] %v95
    %145 = vst [vmem:[#allocation5 + $0xd0] sm:$0xff] %v96
    %146 = vst [vmem:[#allocation5 + $0xd8] sm:$0xff] %v97
    %147 = vst [vmem:[#allocation5 + $0xe0] sm:$0xff] %v98
    %148 = vst [vmem:[#allocation5 + $0xe8] sm:$0xff] %v99
    %149 = vst [vmem:[#allocation5 + $0xf0] sm:$0xff] %v100
    %150 = vst [vmem:[#allocation5 + $0xf8] sm:$0xff] %v101
    %151 = vst [vmem:[#allocation5 + $0x100] sm:$0xff] %v102
    %152 = vst [vmem:[#allocation5 + $0x108] sm:$0xff] %v103
    %153 = vst [vmem:[#allocation5 + $0x110] sm:$0xff] %v104
    %154 = vst [vmem:[#allocation5 + $0x118] sm:$0xff] %v105
    %155 = vst [vmem:[#allocation5 + $0x120] sm:$0xff] %v106
    %156 = vst [vmem:[#allocation5 + $0x128] sm:$0xff] %v107
    %157 = vst [vmem:[#allocation5 + $0x130] sm:$0xff] %v108
    %158 = vst [vmem:[#allocation5 + $0x138] sm:$0xff] %v109
    %159 = vst [vmem:[#allocation5 + $0x140] sm:$0xff] %v110
    %160 = vst [vmem:[#allocation5 + $0x148] sm:$0xff] %v111
    %161 = vst [vmem:[#allocation5 + $0x150] sm:$0xff] %v112
    %162 = vst [vmem:[#allocation5 + $0x158] sm:$0xff] %v113
    %163 = vst [vmem:[#allocation5 + $0x160] sm:$0xff] %v114
    %164 = vst [vmem:[#allocation5 + $0x168] sm:$0xff] %v115
    %165 = vst [vmem:[#allocation5 + $0x170] sm:$0xff] %v116
    %166 = vst [vmem:[#allocation5 + $0x178] sm:$0xff] %v117
    %167 = vst [vmem:[#allocation5 + $0x180] sm:$0xff] %v118
    // Predicated region
    $region10: #{tpu_custom_call.1} parent=1 // pred_check
      _
    $region11: #{tpu_custom_call.1} parent=1 // pred_check_branch
      %169 = sbr.rel (0) target = $region13
    $region12: #{tpu_custom_call.1} parent=1 // pred_region
      %s171 = ssub.s32 6272, 6272
      %172 = vsyncadd [#allocation4], %s171
      %s174 = sshll.u32 [#allocation5], 4
      %s175 = int_to_ptr.vmem [resolvable:$true] %s174
      %177 = dma.vmem_to_hbm [thread:$0]  %s175, 6272, %s1, [#allocation4]
    $region13: #{tpu_custom_call.1} parent=1 // pred_fallthru
      _
    // Predicated region
    $region14: #{tpu_custom_call.1} parent=1 // pred_check
      _
    $region15: #{tpu_custom_call.1} parent=1 // pred_check_branch
      %179 = sbr.rel (0) target = $region17
    $region16: #{tpu_custom_call.1} parent=1 // pred_region
      %180 = dma.done [#allocation4], 6272
    $region17: #{tpu_custom_call.1} parent=1 // pred_fallthru
      _
    %181 = vsyncpa [#allocation3], 1
    %182 = vsyncpa [#allocation4], 1

</llo_original>
